<compile_context>
chip_gen: v7x
topology: tpu7x:2x2x1
jax: 0.10.0
libtpu: 0.0.40
codegen_flags: <defaults>
</compile_context>

<pallas_src>
import jax
import jax.numpy as jnp
from jax.experimental import pallas as pl
from jax.experimental.pallas import tpu as pltpu

RATIO_INIT = 0.5            # `int_v` used to initialize the exe_ratio parameter

_LANE_CANDIDATES = (512, 256, 128)  # lane-dense last dims (multiples of 128)
_SMALL_BYTES = 1 << 20              # <=1 MiB input: single block (overhead-dominated)
_MAX_TILE_BYTES = 4 << 20           # per-step input tile cap (4 MiB -> ~16 MiB live VMEM)
_MIN_STEPS_LARGE = 8                # >=8 grid steps for big inputs (TC sharding + overlap)


def _ratio_kernel(ratio_ref, x_ref, o_ref):
    # ratio_ref : (1,) float32 in SMEM  (the learnable parameter)
    # x_ref     : (block_rows, lane_width) tile of the flattened exe_ids
    # o_ref     : (block_rows, lane_width) output tile
    r = ratio_ref[0].astype(o_ref.dtype)
    o_ref[...] = x_ref[...].astype(o_ref.dtype) * r


def _round_up(x, m):
    return ((x + m - 1) // m) * m


def _pick_block_rows(rows, row_bytes):
    """Rows per tile: multiple of 8 (or == rows), tile <= _MAX_TILE_BYTES, and for
    inputs over ~1 MiB at least _MIN_STEPS_LARGE grid steps (even count when easy,
    so the two v7x TensorCores get balanced work)."""
    if rows * row_bytes <= _SMALL_BYTES:
        return rows                                   # block == full dim -> legal
    cap = max(8, (_MAX_TILE_BYTES // row_bytes) // 8 * 8)
    want = max(8, _round_up(-(-rows // _MIN_STEPS_LARGE), 8))
    br = min(cap, want)
    steps = -(-rows // br)
    if steps > 1 and steps % 2 == 1:                  # prefer an even step count
        alt = max(8, _round_up((rows + steps) // (steps + 1), 8))
        if -(-rows // alt) % 2 == 0:
            br = alt
    return br


def ratio_forward(exe_ratio, exe_ids):
    """exe_ratio: shape-(1,) learnable parameter; exe_ids: arbitrary-shape tensor."""
    exe_ratio = jnp.asarray(exe_ratio).reshape(-1)[:1]
    if not jnp.issubdtype(exe_ratio.dtype, jnp.floating):
        exe_ratio = exe_ratio.astype(jnp.float32)
    # Output dtype follows the parameter's dtype (matches torch promotion; no widening).
    out_dtype = jnp.result_type(exe_ratio.dtype, exe_ids.dtype)

    orig_shape = exe_ids.shape
    n = exe_ids.size
    if n == 0:                                        # empty input: nothing to stream
        return jnp.zeros(orig_shape, out_dtype)

    # The scalar rides in SMEM as a 32-bit value; cast to out_dtype inside the kernel.
    ratio_smem = exe_ratio.astype(jnp.float32)

    lane_width = next((lw for lw in _LANE_CANDIDATES if n % lw == 0), None)
    if lane_width is not None:
        rows = n // lane_width
        x2 = exe_ids.reshape(rows, lane_width)        # free bitcast view, no HBM copy
        padded = False
    else:
        # Ragged element count: pay one pad + slice round trip (rare path).
        # TODO(synk): ragged sizes still cost one extra HBM copy each way; aligned
        # sizes take the copy-free path above.
        lane_width = 128
        rows = -(-n // lane_width)
        flat = jnp.pad(exe_ids.reshape(-1), (0, rows * lane_width - n))
        x2 = flat.reshape(rows, lane_width)
        padded = True

    row_bytes = lane_width * x2.dtype.itemsize
    block_rows = _pick_block_rows(rows, row_bytes)
    grid = (-(-rows // block_rows),)                  # Pallas masks the partial last block

    out_row_bytes = lane_width * jnp.dtype(out_dtype).itemsize
    out2 = pl.pallas_call(
        _ratio_kernel,
        out_shape=jax.ShapeDtypeStruct((rows, lane_width), out_dtype),
        grid=grid,
        in_specs=[
            pl.BlockSpec(memory_space=pltpu.MemorySpace.SMEM),           # exe_ratio
            pl.BlockSpec((block_rows, lane_width), lambda i: (i, 0)),    # exe_ids tile
        ],
        out_specs=pl.BlockSpec((block_rows, lane_width), lambda i: (i, 0)),
        compiler_params=pltpu.CompilerParams(
            dimension_semantics=("parallel",),        # shards grid steps across TCs on v7x
            vmem_limit_bytes=32 * 1024 * 1024,        # tiles use <=16 MiB live, ample headroom
        ),
        cost_estimate=pl.CostEstimate(
            flops=rows * lane_width,
            transcendentals=0,
            bytes_accessed=rows * (row_bytes + out_row_bytes) + 4,
        ),
    )(ratio_smem, x2)

    if padded:
        return out2.reshape(-1)[:n].reshape(orig_shape)
    return out2.reshape(orig_shape)


def _reference(exe_ratio, exe_ids):
    """Pure-JAX mirror of the PyTorch forward: exe_ratio * exe_ids."""
    return jnp.asarray(exe_ratio).reshape(-1)[:1] * exe_ids


if __name__ == "__main__":
    key = jax.random.PRNGKey(0)
    k1, k2, k3 = jax.random.split(key, 3)

    exe_ratio = jnp.full((1,), RATIO_INIT, dtype=jnp.float32)   # nn.Parameter init

    # (seq, batch) integer ids as in the module; size 128 -> copy-free single-block path.
    ids_a = jax.random.bernoulli(k1, p=0.3, shape=(16, 8)).astype(jnp.int32)
    out_a = jax.block_until_ready(ratio_forward(exe_ratio, ids_a))
    ref_a = _reference(exe_ratio, ids_a)
    assert out_a.shape == ids_a.shape and out_a.dtype == ref_a.dtype
    assert jnp.allclose(out_a, ref_a, atol=1e-6, rtol=1e-6), "mismatch (aligned small)"

    # Larger aligned case -> copy-free multi-block grid (>=8 parallel steps).
    ids_b = jax.random.normal(k2, (1024, 512), dtype=jnp.float32)
    out_b = jax.block_until_ready(ratio_forward(exe_ratio, ids_b))
    ref_b = _reference(exe_ratio, ids_b)
    assert jnp.allclose(out_b, ref_b, atol=1e-6, rtol=1e-6), "mismatch (aligned tiled)"

    # Ragged size -> pad/slice fallback path still correct.
    ids_c = jax.random.normal(k3, (70, 600), dtype=jnp.float32)
    out_c = jax.block_until_ready(ratio_forward(exe_ratio, ids_c))
    ref_c = _reference(exe_ratio, ids_c)
    assert out_c.shape == ids_c.shape
    assert jnp.allclose(out_c, ref_c, atol=1e-6, rtol=1e-6), "mismatch (ragged)"

    # bf16 parameter keeps a bf16 output (no store widening).
    ratio_bf16 = exe_ratio.astype(jnp.bfloat16)
    ids_d = jax.random.normal(k1, (16, 8)).astype(jnp.bfloat16)
    out_d = jax.block_until_ready(ratio_forward(ratio_bf16, ids_d))
    ref_d = _reference(ratio_bf16, ids_d)
    assert out_d.dtype == jnp.bfloat16 and ref_d.dtype == jnp.bfloat16
    assert jnp.allclose(out_d.astype(jnp.float32), ref_d.astype(jnp.float32),
                        atol=1e-2, rtol=1e-2), "mismatch (bf16)"

    print("KERNEL_OK")
</pallas_src>

<mosaic_0001>
module attributes {stable_mosaic.version = 11 : i64} {
  func.func @_ratio_kernel(%arg0: i32, %arg1: memref<1xf32, #tpu.memory_space<smem>>, %arg2: memref<1x128xi32, #tpu.memory_space<vmem>>, %arg3: memref<1x128xf32, #tpu.memory_space<vmem>>) attributes {dimension_semantics = [#tpu.dimension_semantics<parallel>], iteration_bounds = array<i64: 1>, scalar_prefetch = 0 : i64, scratch_operands = 0 : i64, tpu.core_type = #tpu.core_type<tc>, window_params = [{transform_indices = @transform_0, window_bounds = array<i64: 1>}, {transform_indices = @transform_1, window_bounds = array<i64: 1, 128>}, {transform_indices = @transform_2, window_bounds = array<i64: 1, 128>}]} {
    %c0 = arith.constant 0 : index
    %0 = memref.load %arg1[%c0] : memref<1xf32, #tpu.memory_space<smem>>
    %c0_0 = arith.constant 0 : index
    %c0_1 = arith.constant 0 : index
    %1 = vector.load %arg2[%c0_0, %c0_1] : memref<1x128xi32, #tpu.memory_space<vmem>>, vector<1x128xi32>
    %2 = arith.sitofp %1 : vector<1x128xi32> to vector<1x128xf32>
    %3 = vector.broadcast %0 : f32 to vector<1x128xf32>
    %4 = arith.mulf %2, %3 : vector<1x128xf32>
    %c0_2 = arith.constant 0 : index
    %c0_3 = arith.constant 0 : index
    %5 = vector.load %arg3[%c0_2, %c0_3] : memref<1x128xf32, #tpu.memory_space<vmem>>, vector<1x128xf32>
    tpu.vector_store %arg3[%c0_2, %c0_3], %4 {strides = array<i32>} : memref<1x128xf32, #tpu.memory_space<vmem>>, vector<1x128xf32>,
    return
  }
  func.func @transform_0(%arg0: i32) -> i32 {
    %c0_i32 = arith.constant 0 : i32
    %c0_i32_0 = arith.constant 0 : i32
    return %c0_i32 : i32
  }
  func.func @transform_1(%arg0: i32) -> (i32, i32) {
    %c0_i32 = arith.constant 0 : i32
    %c0_i32_0 = arith.constant 0 : i32
    return %arg0, %c0_i32 : i32, i32
  }
  func.func @transform_2(%arg0: i32) -> (i32, i32) {
    %c0_i32 = arith.constant 0 : i32
    %c0_i32_0 = arith.constant 0 : i32
    return %arg0, %c0_i32 : i32, i32
  }
}

</mosaic_0001>

<llo_original>
// kernel: tpu_custom_call.1
$region0: #{tpu_custom_call.1}
  #allocation0 [shape = 'u32[]', space=smem, size = 0x4, offset = 0x4, fixed_abs, tag = 'smem constant byte address 0x4 - core index']
  #allocation1 [shape = 'u32[144,128]{1,0:T(1,128)}', space=vmem, size = 0x12000, scoped, tag = 'internal scratch']
  #allocation2 [shape = 'f32[1]{0:T(128)S(6)}', space=smem, size = 0x200, scoped, tag = 'scoped memory for tpu_custom_call.1']
  %s0 = inlined_call_operand.<no memory space> [shape: f32[1], index: 0, kind: input, shape index: {}]
  %s1 = inlined_call_operand.vmem [shape: s32[1,128], index: 1, kind: input, shape index: {}]
  %s2 = inlined_call_operand.hbm [shape: f32[1,128], index: 2, kind: output, shape index: {}]
  %s3 = sld [smem:[#allocation0]]
  $region18: #{tpu_custom_call.1} parent=0
    _
  %s5 = ssub.s32 1, %s3
  %s6 = scalar_select 0, %s5, %s3
  %7 = sst [smem:[#allocation2]] %s0
  $region1: #{tpu_custom_call.1} parent=0
    #allocation3 [shape = 'u8[512]{0}', space=vmem, size = 0x400, scoped, tag = 'output window, operand 0, single buffered']
    #allocation4 [shape = 's32[1]{0}', space=sflag, size = 0x4, scoped, tag = 'scoped memory for tpu_custom_call.1']
    %8 = vsyncpa [#allocation4], 0
    // Predicated region
    $region2: #{tpu_custom_call.1} parent=1 // pred_check
      _
    $region3: #{tpu_custom_call.1} parent=1 // pred_check_branch
      %10 = sbr.rel (0) target = $region5
    $region4: #{tpu_custom_call.1} parent=1 // pred_region
      _
    $region5: #{tpu_custom_call.1} parent=1 // pred_fallthru
      _
    // Predicated region
    $region6: #{tpu_custom_call.1} parent=1 // pred_check
      _
    $region7: #{tpu_custom_call.1} parent=1 // pred_check_branch
      %12 = sbr.rel (0) target = $region9
    $region8: #{tpu_custom_call.1} parent=1 // pred_region
      _
    $region9: #{tpu_custom_call.1} parent=1 // pred_fallthru
      _
    %s13 = sld [smem:[#allocation2]]
    %v14 = vld [vmem:[%s1] sm:$0x1]
    %v15 = vcvt.s32.f32 %v14
    %v16 = vstv %s13
    %v17 = vmul.f32 %v15, %v16
    %18 = vst [vmem:[#allocation3] sm:$0x1] %v17
    // Predicated region
    $region10: #{tpu_custom_call.1} parent=1 // pred_check
      _
    $region11: #{tpu_custom_call.1} parent=1 // pred_check_branch
      %20 = sbr.rel (0) target = $region13
    $region12: #{tpu_custom_call.1} parent=1 // pred_region
      %s22 = ssub.s32 16, 16
      %23 = vsyncadd [#allocation4], %s22
      %s25 = sshll.u32 [#allocation3], 4
      %s26 = int_to_ptr.vmem [resolvable:$true] %s25
      %28 = dma.vmem_to_hbm [thread:$0]  %s26, 16, %s2, [#allocation4]
    $region13: #{tpu_custom_call.1} parent=1 // pred_fallthru
      _
    // Predicated region
    $region14: #{tpu_custom_call.1} parent=1 // pred_check
      _
    $region15: #{tpu_custom_call.1} parent=1 // pred_check_branch
      %30 = sbr.rel (0) target = $region17
    $region16: #{tpu_custom_call.1} parent=1 // pred_region
      %31 = dma.done [#allocation4], 16
    $region17: #{tpu_custom_call.1} parent=1 // pred_fallthru
      _
    %32 = vsyncpa [#allocation4], 1

</llo_original>
